<compile_context>
chip_gen: v6e
topology: v6e:2x2x1
jax: 0.10.0
libtpu: 0.0.40
codegen_flags: <defaults>
</compile_context>

<pallas_src>
import functools
import math

import numpy as np
import jax
import jax.numpy as jnp
from jax.experimental import pallas as pl
from jax.experimental.pallas import tpu as pltpu


_NEG_LARGE = -1e30  # finite "minus infinity": keeps padded vocab columns inert


def _round_up(x, m):
    return ((x + m - 1) // m) * m


def _vmem_capacity_bytes():
    """Device VMEM capacity (falls back to the smallest generation, v7x)."""
    try:
        info = pltpu.get_tpu_info()
        cap = getattr(info, "vmem_capacity_bytes", None)
        if cap:
            return int(cap)
    except Exception:
        pass
    return 64 * 1024 * 1024


def _proj_logsoftmax_kernel(x_ref, wt_ref, b_ref, o_ref, m_sc, l_sc,
                            *cache_sc, use_cache):
    """Grid step (row tile i, pass p, vocab tile j).

    p == 0: compute logits tile, cache it (if enabled), accumulate online
            max / sum-exp statistics.
    p == 1: read cached tile (or recompute) and emit log-probabilities.
    """
    p = pl.program_id(1)
    j = pl.program_id(2)

    @pl.when(jnp.logical_and(p == 0, j == 0))
    def _init():
        m_sc[...] = jnp.full_like(m_sc, _NEG_LARGE)
        l_sc[...] = jnp.zeros_like(l_sc)

    @pl.when(p == 0)
    def _stats():
        # Canonical (tm, d) @ (d, tn) MXU matmul, f32 accumulation.
        s = jnp.dot(x_ref[...], wt_ref[...],
                    preferred_element_type=jnp.float32) + b_ref[...]
        m_old = m_sc[...]
        m_new = jnp.maximum(m_old, jnp.max(s, axis=-1, keepdims=True))
        l_sc[...] = (l_sc[...] * jnp.exp(m_old - m_new)
                     + jnp.sum(jnp.exp(s - m_new), axis=-1, keepdims=True))
        m_sc[...] = m_new
        if use_cache:
            cache_sc[0][j] = s          # stash logits tile for pass 1

    @pl.when(p == 1)
    def _finalize():
        lse = m_sc[...] + jnp.log(l_sc[...])
        if use_cache:
            s = cache_sc[0][j]          # no second matmul / weight read
        else:
            s = jnp.dot(x_ref[...], wt_ref[...],
                        preferred_element_type=jnp.float32) + b_ref[...]
        o_ref[...] = (s - lse).astype(o_ref.dtype)


def projection_layer(x, weight, bias, *, tm=512, tn=512, matmul_dtype=None,
                     out_dtype=None, cache_logits=None, weight_buffers=2):
    """Fused Linear + log_softmax.

    x:      (B, S, d_model)
    weight: (vocab, d_model)   (PyTorch nn.Linear layout)
    bias:   (vocab,)
    cache_logits: None = auto (cache when it fits VMEM), True/False = force.
    weight_buffers: pipeline depth for the weight stream (sweep 2-4).
    """
    B, S, d_model = x.shape
    vocab, d_model_w = weight.shape
    assert d_model_w == d_model
    out_dtype = x.dtype if out_dtype is None else out_dtype
    out_isz = np.dtype(out_dtype).itemsize

    M = B * S
    tn_eff = _round_up(min(max(tn, 128), _round_up(vocab, 128)), 128)
    V_pad = _round_up(vocab, tn_eff)
    n_v = V_pad // tn_eff

    compute_dtype = jnp.dtype(matmul_dtype) if matmul_dtype is not None else x.dtype
    cdt_isz = np.dtype(compute_dtype).itemsize

    def choose_tm(tm_cap):
        """Balanced row tiling: no near-empty tail tile, multiple of 8."""
        cap = max(8, min(_round_up(tm_cap, 8), _round_up(M, 8)))
        n_m = -(-M // cap)
        t = _round_up(-(-M // n_m), 8)
        return t, n_m

    def vmem_bytes(tm_c, with_cache):
        """Pipelined tiles + scratch (+ logits cache)."""
        tiles = (2 * tm_c * d_model * cdt_isz                          # x
                 + max(2, weight_buffers) * d_model * tn_eff * cdt_isz  # weight
                 + 2 * tn_eff * 4                                        # bias
                 + 2 * tm_c * tn_eff * out_isz)                          # out
        scratch = 2 * tm_c * 128 * 4            # (tm,1) stats pad to 128 lanes
        cache = n_v * tm_c * tn_eff * 4 if with_cache else 0
        return tiles + scratch + cache

    vmem_budget = _vmem_capacity_bytes() - 4 * 1024 * 1024   # per-device cap
    slack = 8 * 1024 * 1024                                   # compiler headroom

    tm_eff, n_m = choose_tm(tm)
    if cache_logits is True:
        use_cache = True
    elif cache_logits is False:
        use_cache = False
    else:
        # Auto: use the largest tm (>=128 or >=M) whose logits cache fits VMEM;
        # otherwise fall back to recomputation (second weight sweep).
        use_cache = False
        cand = tm_eff
        tm_floor = min(tm_eff, 128)
        while True:
            if vmem_bytes(cand, True) + slack <= vmem_budget:
                use_cache = True
                tm_eff, n_m = choose_tm(cand)
                break
            if cand <= tm_floor:
                break
            cand = max(tm_floor, _round_up(cand // 2, 8))
    M_pad = n_m * tm_eff

    x2d = x.reshape(M, d_model)
    if M_pad != M:
        x2d = jnp.pad(x2d, ((0, M_pad - M), (0, 0)))

    w_p, b_p = weight, bias
    if V_pad != vocab:
        # Padded vocab rows: zero weights + hugely negative bias -> they
        # contribute nothing to the logsumexp and are sliced away afterwards.
        w_p = jnp.pad(weight, ((0, V_pad - vocab), (0, 0)))
        b_p = jnp.pad(bias, ((0, V_pad - vocab),), constant_values=_NEG_LARGE)

    # One-time HBM transpose -> canonical (tm,d)@(d,tn) MXU feed in the kernel.
    w_t = jnp.transpose(w_p)                     # (d_model, V_pad)
    b2d = b_p.reshape(1, V_pad).astype(jnp.float32)

    if matmul_dtype is not None:
        # Cast once in the wrapper: halves weight HBM bytes vs. in-kernel cast.
        x2d = x2d.astype(matmul_dtype)
        w_t = w_t.astype(matmul_dtype)

    last_v = n_v - 1
    if use_cache:
        # Freeze weight/bias on their last pass-0 block during pass 1 so the
        # pipeline never re-streams the weight (single sweep per row tile).
        def wb_map(i, p, j):
            return (0, (1 - p) * j + p * last_v)
    else:
        def wb_map(i, p, j):
            return (0, j)

    w_spec_kwargs = {}
    if weight_buffers and weight_buffers != 2:
        w_spec_kwargs["pipeline_mode"] = pl.Buffered(weight_buffers)
    w_spec = pl.BlockSpec((d_model, tn_eff), wb_map, **w_spec_kwargs)

    scratch_shapes = [pltpu.VMEM((tm_eff, 1), jnp.float32),   # running max
                      pltpu.VMEM((tm_eff, 1), jnp.float32)]   # running sum-exp
    if use_cache:
        scratch_shapes.append(pltpu.VMEM((n_v, tm_eff, tn_eff), jnp.float32))

    vmem_est = vmem_bytes(tm_eff, use_cache)
    vmem_limit = int(max(min(vmem_budget, vmem_est + slack), 32 * 1024 * 1024))

    n_sweeps = 1 if use_cache else 2
    w_isz = np.dtype(w_t.dtype).itemsize
    cost = pl.CostEstimate(
        flops=int(2 * n_sweeps * M_pad * d_model * V_pad),
        transcendentals=int(M_pad * V_pad),
        bytes_accessed=int(x2d.size * np.dtype(x2d.dtype).itemsize
                           + n_sweeps * n_m * V_pad * d_model * w_isz
                           + V_pad * 4
                           + M_pad * V_pad * out_isz),
    )

    kernel = functools.partial(_proj_logsoftmax_kernel, use_cache=use_cache)

    out = pl.pallas_call(
        kernel,
        out_shape=jax.ShapeDtypeStruct((M_pad, V_pad), out_dtype),
        grid_spec=pltpu.PrefetchScalarGridSpec(
            num_scalar_prefetch=0,
            grid=(n_m, 2, n_v),                 # (row tiles, pass, vocab tiles)
            in_specs=[
                pl.BlockSpec((tm_eff, d_model), lambda i, p, j: (i, 0)),
                w_spec,
                pl.BlockSpec((1, tn_eff), wb_map),
            ],
            # Output block pinned to (i, 0) during the stats pass (never
            # written there); written exactly once, with final data, in pass 1.
            out_specs=pl.BlockSpec((tm_eff, tn_eff), lambda i, p, j: (i, j * p)),
            scratch_shapes=scratch_shapes,
        ),
        compiler_params=pltpu.CompilerParams(
            dimension_semantics=("parallel", "arbitrary", "arbitrary"),
            vmem_limit_bytes=vmem_limit,
        ),
        cost_estimate=cost,
    )(x2d, w_t, b2d)

    return out[:M, :vocab].reshape(B, S, vocab)


if __name__ == "__main__":
    # Small shapes consistent with the module's forward; tn=128 forces several
    # vocab tiles so both the online-logsumexp and the cache path are exercised.
    batch, seq, d_model, vocab = 2, 8, 64, 512

    key = jax.random.PRNGKey(0)
    kx, kw, kb = jax.random.split(key, 3)

    # nn.Linear-style init: U(-1/sqrt(d_model), 1/sqrt(d_model)).
    bound = 1.0 / math.sqrt(d_model)
    weight = jax.random.uniform(kw, (vocab, d_model), jnp.float32, -bound, bound)
    bias = jax.random.uniform(kb, (vocab,), jnp.float32, -bound, bound)
    x = jax.random.normal(kx, (batch, seq, d_model), jnp.float32)

    ref = jax.nn.log_softmax(x @ weight.T + bias, axis=-1)

    # 1) Default path: logits cached in VMEM -> single weight sweep, f32 MXU.
    out = projection_layer(x, weight, bias, tn=128)
    jax.block_until_ready(out)
    assert out.shape == (batch, seq, vocab)
    assert jnp.allclose(out, ref, atol=1e-5, rtol=1e-5), \
        float(jnp.max(jnp.abs(out - ref)))

    # 2) Recompute fallback (large-vocab path), f32 MXU.
    out_rc = projection_layer(x, weight, bias, tn=128, cache_logits=False)
    jax.block_until_ready(out_rc)
    assert jnp.allclose(out_rc, ref, atol=1e-5, rtol=1e-5), \
        float(jnp.max(jnp.abs(out_rc - ref)))

    # 3) bf16 MXU operands (cast once in the wrapper), f32 accumulation and
    #    f32 softmax math — looser tolerance.
    out_bf16 = projection_layer(x, weight, bias, tn=128,
                                matmul_dtype=jnp.bfloat16,
                                out_dtype=jnp.float32)
    jax.block_until_ready(out_bf16)
    assert jnp.allclose(out_bf16, ref, atol=5e-2, rtol=0), \
        float(jnp.max(jnp.abs(out_bf16 - ref)))

    print("KERNEL_OK")
</pallas_src>

<mosaic_0001>
module attributes {stable_mosaic.version = 11 : i64} {
  func.func @_proj_logsoftmax_kernel(%arg0: i32, %arg1: i32, %arg2: i32, %arg3: memref<16x64xf32, #tpu.memory_space<vmem>>, %arg4: memref<64x128xf32, #tpu.memory_space<vmem>>, %arg5: memref<1x128xf32, #tpu.memory_space<vmem>>, %arg6: memref<16x128xf32, #tpu.memory_space<vmem>>, %arg7: memref<16x1xf32, #tpu.memory_space<vmem>>, %arg8: memref<16x1xf32, #tpu.memory_space<vmem>>, %arg9: memref<4x16x128xf32, #tpu.memory_space<vmem>>) attributes {dimension_semantics = [#tpu.dimension_semantics<parallel>, #tpu.dimension_semantics<arbitrary>, #tpu.dimension_semantics<arbitrary>], iteration_bounds = array<i64: 1, 2, 4>, scalar_prefetch = 0 : i64, scratch_operands = 3 : i64, tpu.core_type = #tpu.core_type<tc>, window_params = [{transform_indices = @transform_0, window_bounds = array<i64: 16, 64>}, {transform_indices = @transform_1, window_bounds = array<i64: 64, 128>}, {transform_indices = @transform_2, window_bounds = array<i64: 1, 128>}, {transform_indices = @transform_3, window_bounds = array<i64: 16, 128>}]} {
    %c0_i32 = arith.constant 0 : i32
    %0 = arith.cmpi eq, %arg1, %c0_i32 : i32
    %c0_i32_0 = arith.constant 0 : i32
    %1 = arith.cmpi eq, %arg2, %c0_i32_0 : i32
    %2 = arith.andi %0, %1 : i1
    %3 = arith.extui %2 : i1 to i32
    %c0_i32_1 = arith.constant 0 : i32
    %4 = arith.cmpi ne, %3, %c0_i32_1 : i32
    scf.if %4 {
      %cst = arith.constant -1.000000e+30 : f32
      %11 = vector.broadcast %cst : f32 to vector<16x1xf32>
      %c0 = arith.constant 0 : index
      %c0_5 = arith.constant 0 : index
      %12 = vector.load %arg7[%c0, %c0_5] : memref<16x1xf32, #tpu.memory_space<vmem>>, vector<16x1xf32>
      tpu.vector_store %arg7[%c0, %c0_5], %11 {strides = array<i32>} : memref<16x1xf32, #tpu.memory_space<vmem>>, vector<16x1xf32>,
      %cst_6 = arith.constant 0.000000e+00 : f32
      %13 = vector.broadcast %cst_6 : f32 to vector<16x1xf32>
      %c0_7 = arith.constant 0 : index
      %c0_8 = arith.constant 0 : index
      %14 = vector.load %arg8[%c0_7, %c0_8] : memref<16x1xf32, #tpu.memory_space<vmem>>, vector<16x1xf32>
      tpu.vector_store %arg8[%c0_7, %c0_8], %13 {strides = array<i32>} : memref<16x1xf32, #tpu.memory_space<vmem>>, vector<16x1xf32>,
    } else {
    }
    %c0_i32_2 = arith.constant 0 : i32
    %5 = arith.cmpi eq, %arg1, %c0_i32_2 : i32
    %6 = arith.extui %5 : i1 to i32
    %c0_i32_3 = arith.constant 0 : i32
    %7 = arith.cmpi ne, %6, %c0_i32_3 : i32
    scf.if %7 {
      %c0 = arith.constant 0 : index
      %c0_5 = arith.constant 0 : index
      %11 = vector.load %arg3[%c0, %c0_5] : memref<16x64xf32, #tpu.memory_space<vmem>>, vector<16x64xf32>
      %c0_6 = arith.constant 0 : index
      %c0_7 = arith.constant 0 : index
      %12 = vector.load %arg4[%c0_6, %c0_7] : memref<64x128xf32, #tpu.memory_space<vmem>>, vector<64x128xf32>
      %cst = arith.constant dense<0.000000e+00> : vector<16x128xf32>
      %13 = tpu.matmul %11, %12, %cst {dimension_numbers = #tpu.dot_dimension_numbers<[1], [0], [0], [1], [0, 0, 1, 1], [], []>} : vector<16x64xf32>, vector<64x128xf32>, vector<16x128xf32> -> vector<16x128xf32>
      %c0_8 = arith.constant 0 : index
      %c0_9 = arith.constant 0 : index
      %14 = vector.load %arg5[%c0_8, %c0_9] : memref<1x128xf32, #tpu.memory_space<vmem>>, vector<1x128xf32>
      %15 = vector.broadcast %14 : vector<1x128xf32> to vector<16x128xf32>
      %16 = arith.addf %13, %15 : vector<16x128xf32>
      %c0_10 = arith.constant 0 : index
      %c0_11 = arith.constant 0 : index
      %17 = vector.load %arg7[%c0_10, %c0_11] : memref<16x1xf32, #tpu.memory_space<vmem>>, vector<16x1xf32>
      %cst_12 = arith.constant dense<0xFF800000> : vector<16xf32>
      %18 = vector.multi_reduction <maximumf>, %16, %cst_12 [1] : vector<16x128xf32> to vector<16xf32>
      %19 = vector.shape_cast %18 : vector<16xf32> to vector<16x1xf32>
      %20 = arith.maximumf %17, %19 : vector<16x1xf32>
      %c0_13 = arith.constant 0 : index
      %c0_14 = arith.constant 0 : index
      %21 = vector.load %arg8[%c0_13, %c0_14] : memref<16x1xf32, #tpu.memory_space<vmem>>, vector<16x1xf32>
      %22 = arith.subf %17, %20 : vector<16x1xf32>
      %23 = math.exp %22 : vector<16x1xf32>
      %24 = arith.mulf %21, %23 : vector<16x1xf32>
      %25 = vector.broadcast %20 : vector<16x1xf32> to vector<16x128xf32>
      %26 = arith.subf %16, %25 : vector<16x128xf32>
      %27 = math.exp %26 : vector<16x128xf32>
      %cst_15 = arith.constant dense<0.000000e+00> : vector<16xf32>
      %28 = vector.multi_reduction <add>, %27, %cst_15 [1] : vector<16x128xf32> to vector<16xf32>
      %29 = vector.shape_cast %28 : vector<16xf32> to vector<16x1xf32>
      %30 = arith.addf %24, %29 : vector<16x1xf32>
      %c0_16 = arith.constant 0 : index
      %c0_17 = arith.constant 0 : index
      %31 = vector.load %arg8[%c0_16, %c0_17] : memref<16x1xf32, #tpu.memory_space<vmem>>, vector<16x1xf32>
      tpu.vector_store %arg8[%c0_16, %c0_17], %30 {strides = array<i32>} : memref<16x1xf32, #tpu.memory_space<vmem>>, vector<16x1xf32>,
      %c0_18 = arith.constant 0 : index
      %c0_19 = arith.constant 0 : index
      %32 = vector.load %arg7[%c0_18, %c0_19] : memref<16x1xf32, #tpu.memory_space<vmem>>, vector<16x1xf32>
      tpu.vector_store %arg7[%c0_18, %c0_19], %20 {strides = array<i32>} : memref<16x1xf32, #tpu.memory_space<vmem>>, vector<16x1xf32>,
      %33 = arith.index_cast %arg2 : i32 to index
      %c0_20 = arith.constant 0 : index
      %c0_21 = arith.constant 0 : index
      %34 = vector.load %arg9[%33, %c0_20, %c0_21] : memref<4x16x128xf32, #tpu.memory_space<vmem>>, vector<1x16x128xf32>
      %35 = vector.shape_cast %34 : vector<1x16x128xf32> to vector<16x128xf32>
      %36 = vector.shape_cast %16 : vector<16x128xf32> to vector<1x16x128xf32>
      tpu.vector_store %arg9[%33, %c0_20, %c0_21], %36 {strides = array<i32>} : memref<4x16x128xf32, #tpu.memory_space<vmem>>, vector<1x16x128xf32>,
    } else {
    }
    %c1_i32 = arith.constant 1 : i32
    %8 = arith.cmpi eq, %arg1, %c1_i32 : i32
    %9 = arith.extui %8 : i1 to i32
    %c0_i32_4 = arith.constant 0 : i32
    %10 = arith.cmpi ne, %9, %c0_i32_4 : i32
    scf.if %10 {
      %c0 = arith.constant 0 : index
      %c0_5 = arith.constant 0 : index
      %11 = vector.load %arg7[%c0, %c0_5] : memref<16x1xf32, #tpu.memory_space<vmem>>, vector<16x1xf32>
      %c0_6 = arith.constant 0 : index
      %c0_7 = arith.constant 0 : index
      %12 = vector.load %arg8[%c0_6, %c0_7] : memref<16x1xf32, #tpu.memory_space<vmem>>, vector<16x1xf32>
      %13 = math.log %12 : vector<16x1xf32>
      %14 = arith.addf %11, %13 : vector<16x1xf32>
      %15 = arith.index_cast %arg2 : i32 to index
      %c0_8 = arith.constant 0 : index
      %c0_9 = arith.constant 0 : index
      %16 = vector.load %arg9[%15, %c0_8, %c0_9] : memref<4x16x128xf32, #tpu.memory_space<vmem>>, vector<1x16x128xf32>
      %17 = vector.shape_cast %16 : vector<1x16x128xf32> to vector<16x128xf32>
      %18 = vector.broadcast %14 : vector<16x1xf32> to vector<16x128xf32>
      %19 = arith.subf %17, %18 : vector<16x128xf32>
      %c0_10 = arith.constant 0 : index
      %c0_11 = arith.constant 0 : index
      %20 = vector.load %arg6[%c0_10, %c0_11] : memref<16x128xf32, #tpu.memory_space<vmem>>, vector<16x128xf32>
      tpu.vector_store %arg6[%c0_10, %c0_11], %19 {strides = array<i32>} : memref<16x128xf32, #tpu.memory_space<vmem>>, vector<16x128xf32>,
    } else {
    }
    return
  }
  func.func @transform_0(%arg0: i32, %arg1: i32, %arg2: i32) -> (i32, i32) {
    %c0_i32 = arith.constant 0 : i32
    %c0_i32_0 = arith.constant 0 : i32
    return %arg0, %c0_i32 : i32, i32
  }
  func.func @transform_1(%arg0: i32, %arg1: i32, %arg2: i32) -> (i32, i32) {
    %c1_i32 = arith.constant 1 : i32
    %0 = arith.subi %c1_i32, %arg1 : i32
    %1 = arith.muli %0, %arg2 : i32
    %c3_i32 = arith.constant 3 : i32
    %2 = arith.muli %arg1, %c3_i32 : i32
    %3 = arith.addi %1, %2 : i32
    %c0_i32 = arith.constant 0 : i32
    %c0_i32_0 = arith.constant 0 : i32
    return %c0_i32, %3 : i32, i32
  }
  func.func @transform_2(%arg0: i32, %arg1: i32, %arg2: i32) -> (i32, i32) {
    %c1_i32 = arith.constant 1 : i32
    %0 = arith.subi %c1_i32, %arg1 : i32
    %1 = arith.muli %0, %arg2 : i32
    %c3_i32 = arith.constant 3 : i32
    %2 = arith.muli %arg1, %c3_i32 : i32
    %3 = arith.addi %1, %2 : i32
    %c0_i32 = arith.constant 0 : i32
    %c0_i32_0 = arith.constant 0 : i32
    return %c0_i32, %3 : i32, i32
  }
  func.func @transform_3(%arg0: i32, %arg1: i32, %arg2: i32) -> (i32, i32) {
    %0 = arith.muli %arg2, %arg1 : i32
    %c0_i32 = arith.constant 0 : i32
    return %arg0, %0 : i32, i32
  }
}

</mosaic_0001>

<llo_original>
// kernel: tpu_custom_call.1
$region0: #{tpu_custom_call.1}
  #allocation0 [shape = 'u32[]', space=smem, size = 0x4, offset = 0x4, fixed_abs, tag = 'smem constant byte address 0x4 - core index']
  #allocation1 [shape = 'u32[144,128]{1,0:T(1,128)}', space=vmem, size = 0x12000, scoped, tag = 'internal scratch']
  #allocation2 [shape = 'f32[16,1]{1,0:T(8,128)}', space=vmem, size = 0x2000, scoped, tag = 'scratch operand']
  #allocation3 [shape = 'f32[16,1]{1,0:T(8,128)}', space=vmem, size = 0x2000, scoped, tag = 'scratch operand']
  #allocation4 [shape = 'f32[4,16,128]{2,1,0:T(8,128)}', space=vmem, size = 0x8000, scoped, tag = 'scratch operand']
  %s0 = inlined_call_operand.hbm [shape: f32[16,64], index: 0, kind: input, shape index: {}]
  %s1 = inlined_call_operand.hbm [shape: f32[64,512], index: 1, kind: input, shape index: {}]
  %s2 = inlined_call_operand.hbm [shape: f32[1,512], index: 2, kind: input, shape index: {}]
  %s3 = inlined_call_operand.hbm [shape: f32[16,512], index: 3, kind: output, shape index: {}]
  %s4 = sld [smem:[#allocation0]]
  $region69: #{tpu_custom_call.1} parent=0
    _
  %s6 = ssub.s32 1, %s4
  %s7 = scalar_select 0, %s6, %s4
  $region1: #{tpu_custom_call.1} parent=0
    #allocation5 [shape = 'u8[8192]{0}', space=vmem, size = 0x2000, scoped, tag = 'input window, operand 0, single buffered']
    #allocation6 [shape = 's32[2]{0}', space=sflag, size = 0x8, scoped, tag = 'scoped memory for tpu_custom_call.1']
    #allocation7 [shape = 's32[2]{0}', space=sflag, size = 0x8, scoped, tag = 'scoped memory for tpu_custom_call.1']
    #allocation8 [shape = 'u8[65536]{0}', space=vmem, size = 0x10000, scoped, tag = 'input window, operand 1']
    #allocation9 [shape = 's32[2]{0}', space=sflag, size = 0x8, scoped, tag = 'scoped memory for tpu_custom_call.1']
    #allocation10 [shape = 'u8[1024]{0}', space=vmem, size = 0x400, scoped, tag = 'input window, operand 2']
    #allocation11 [shape = 'u8[16384]{0}', space=vmem, size = 0x4000, scoped, tag = 'output window, operand 0']
    %8 = vsyncpa [#allocation6], 0
    %9 = vsyncpa [#allocation9], 0
    %s10 = scalar_lea.sflag [#allocation9], 1
    %11 = vsyncpa %s10, 0
    %12 = vsyncpa [#allocation7], 0
    %s13 = scalar_lea.sflag [#allocation7], 1
    %14 = vsyncpa %s13, 0
    loop: start=0, step=1, limit=10
    $region2: #{tpu_custom_call.1} parent=1 // loop_pre_header
      _
    $region3: #{tpu_custom_call.1} parent=1 // loop_header
      %s16 = sphi 0, %s20
      %p17 = scmp.ge.s32.totalorder %s16, 10
      %s23 = sphi 0, %s42
      %s24 = sphi 0, %s38
      %s25 = sphi 0, %s34
      %s26 = sphi 0, %s23
      %s27 = sphi 0, %s24
      %s28 = sphi 0, %s25
      %s29 = sphi 0, %s26
      %s30 = sphi 0, %s27
      %s31 = sphi 0, %s28
      %s45 = sphi 0, %s47
      %s48 = sphi 0, %s45
      %s49 = sphi 0, %s48
      %s65 = sphi 0, %s49
      %s79 = sphi 0, %s81
      %s82 = sphi 0, %s79
      %s83 = sphi 0, %s82
      %s99 = sphi 0, %s83
      %s113 = sphi 0, %s115
      %s116 = sphi 0, %s113
      %s117 = sphi 0, %s116
      %s133 = sphi 0, %s117
      %s143 = sphi 0, %s145
      %s146 = sphi 0, %s143
      %s147 = sphi 0, %s146
      %s163 = sphi 0, %s147
    $region4: #{tpu_custom_call.1} parent=1 // loop_header_branch
      %19 = sbr.rel (%p17) target = $region8
    $region5: #{tpu_custom_call.1} parent=1 // loop_body
      %s21 = ssub.s32 %s16, 1
      %s22 = ssub.s32 %s16, 2
      %s32 = sadd.s32 1, %s25
      %p33 = scmp.ge.s32.totalorder %s32, 4
      %s34 = scalar_select %p33, 0, %s32
      %s35 = sadd.s32 1, %s24
      %s36 = scalar_select %p33, %s35, %s24
      %p37 = scmp.ge.s32.totalorder %s36, 2
      %s38 = scalar_select %p37, 0, %s36
      %s39 = sadd.s32 1, %s23
      %s40 = scalar_select %p37, %s39, %s23
      %p41 = scmp.ge.s32.totalorder %s40, 1
      %s42 = scalar_select %p41, 0, %s40
      %s43 = ssub.s32 %s23, %s42
      %p44 = scmp.eq.s32.totalorder %s43, 0
      %s46 = sadd.s32 %s45, 1
      %s47 = scalar_select %p44, %s45, %s46
      %p50 = pneg %p44
      %p51 = scmp.eq.s32.totalorder %s16, 7
      %p52 = por %p50, %p51
      %p53 = scmp.ne.s32.totalorder %s45, %s48
      %p54 = scmp.eq.s32.totalorder %s16, 0
      %p55 = por %p53, %p54
      %p56 = scmp.ne.s32.totalorder %s45, %s48
      %p57 = scmp.eq.s32.totalorder %s21, 7
      %p58 = por %p56, %p57
      %p59 = scmp.ne.s32.totalorder %s48, %s49
      %p60 = scmp.eq.s32.totalorder %s21, 0
      %p61 = por %p59, %p60
      %p62 = scmp.ne.s32.totalorder %s48, %s49
      %p63 = scmp.eq.s32.totalorder %s22, 7
      %p64 = por %p62, %p63
      %p66 = scmp.ne.s32.totalorder %s49, %s65
      %p67 = scmp.eq.s32.totalorder %s22, 0
      %p68 = por %p66, %p67
      %s69 = ssub.s32 1, %s24
      %s70 = smul.u32 %s69, %s25
      %s71 = smul.u32 %s24, 3
      %s72 = sadd.s32 %s70, %s71
      %s73 = ssub.s32 1, %s38
      %s74 = smul.u32 %s73, %s34
      %s75 = smul.u32 %s38, 3
      %s76 = sadd.s32 %s74, %s75
      %s77 = ssub.s32 %s72, %s76
      %p78 = scmp.eq.s32.totalorder %s77, 0
      %s80 = sadd.s32 %s79, 1
      %s81 = scalar_select %p78, %s79, %s80
      %p84 = pneg %p78
      %p85 = scmp.eq.s32.totalorder %s16, 7
      %p86 = por %p84, %p85
      %p87 = scmp.ne.s32.totalorder %s79, %s82
      %p88 = scmp.eq.s32.totalorder %s16, 0
      %p89 = por %p87, %p88
      %p90 = scmp.ne.s32.totalorder %s79, %s82
      %p91 = scmp.eq.s32.totalorder %s21, 7
      %p92 = por %p90, %p91
      %p93 = scmp.ne.s32.totalorder %s82, %s83
      %p94 = scmp.eq.s32.totalorder %s21, 0
      %p95 = por %p93, %p94
      %p96 = scmp.ne.s32.totalorder %s82, %s83
      %p97 = scmp.eq.s32.totalorder %s22, 7
      %p98 = por %p96, %p97
      %p100 = scmp.ne.s32.totalorder %s83, %s99
      %p101 = scmp.eq.s32.totalorder %s22, 0
      %p102 = por %p100, %p101
      %s103 = ssub.s32 1, %s24
      %s104 = smul.u32 %s103, %s25
      %s105 = smul.u32 %s24, 3
      %s106 = sadd.s32 %s104, %s105
      %s107 = ssub.s32 1, %s38
      %s108 = smul.u32 %s107, %s34
      %s109 = smul.u32 %s38, 3
      %s110 = sadd.s32 %s108, %s109
      %s111 = ssub.s32 %s106, %s110
      %p112 = scmp.eq.s32.totalorder %s111, 0
      %s114 = sadd.s32 %s113, 1
      %s115 = scalar_select %p112, %s113, %s114
      %p118 = pneg %p112
      %p119 = scmp.eq.s32.totalorder %s16, 7
      %p120 = por %p118, %p119
      %p121 = scmp.ne.s32.totalorder %s113, %s116
      %p122 = scmp.eq.s32.totalorder %s16, 0
      %p123 = por %p121, %p122
      %p124 = scmp.ne.s32.totalorder %s113, %s116
      %p125 = scmp.eq.s32.totalorder %s21, 7
      %p126 = por %p124, %p125
      %p127 = scmp.ne.s32.totalorder %s116, %s117
      %p128 = scmp.eq.s32.totalorder %s21, 0
      %p129 = por %p127, %p128
      %p130 = scmp.ne.s32.totalorder %s116, %s117
      %p131 = scmp.eq.s32.totalorder %s22, 7
      %p132 = por %p130, %p131
      %p134 = scmp.ne.s32.totalorder %s117, %s133
      %p135 = scmp.eq.s32.totalorder %s22, 0
      %p136 = por %p134, %p135
      %s137 = smul.u32 %s25, %s24
      %s138 = smul.u32 %s34, %s38
      %s139 = ssub.s32 %s23, %s42
      %s140 = ssub.s32 %s137, %s138
      %s141 = sor.u32 %s139, %s140
      %p142 = scmp.eq.s32.totalorder %s141, 0
      %s144 = sadd.s32 %s143, 1
      %s145 = scalar_select %p142, %s143, %s144
      %p148 = pneg %p142
      %p149 = scmp.eq.s32.totalorder %s16, 7
      %p150 = por %p148, %p149
      %p151 = scmp.ne.s32.totalorder %s143, %s146
      %p152 = scmp.eq.s32.totalorder %s16, 0
      %p153 = por %p151, %p152
      %p154 = scmp.ne.s32.totalorder %s143, %s146
      %p155 = scmp.eq.s32.totalorder %s21, 7
      %p156 = por %p154, %p155
      %p157 = scmp.ne.s32.totalorder %s146, %s147
      %p158 = scmp.eq.s32.totalorder %s21, 0
      %p159 = por %p157, %p158
      %p160 = scmp.ne.s32.totalorder %s146, %s147
      %p161 = scmp.eq.s32.totalorder %s22, 7
      %p162 = por %p160, %p161
      %p164 = scmp.ne.s32.totalorder %s147, %s163
      %p165 = scmp.eq.s32.totalorder %s22, 0
      %p166 = por %p164, %p165
      %p167 = scmp.le.s32.totalorder 1, %s16
      %p168 = scmp.lt.s32.totalorder %s16, 9
      %p169 = pnand %p167, %p168
      %p170 = pneg %p169
      // Predicated region
      $region9: #{tpu_custom_call.1} parent=5 // pred_check
        _
      $region10: #{tpu_custom_call.1} parent=5 // pred_check_branch
        %172 = sbr.rel (%p169) target = $region12
      $region11: #{tpu_custom_call.1} parent=5 // pred_region
        %s173 = ssub.s32 %s16, 1
        // Predicated region
        $region13: #{tpu_custom_call.1} parent=11 // pred_check
          %p174 = pneg %p61
        $region14: #{tpu_custom_call.1} parent=11 // pred_check_branch
          %176 = sbr.rel (%p174) target = $region16
        $region15: #{tpu_custom_call.1} parent=11 // pred_region
          %s177 = smul.u32 2, %s26
          %s179 = ssub.s32 256, 256
          %180 = vsyncadd [#allocation6], %s179
          %s181 = smul.addr %s177, 128
          %s182 = scalar_lea.hbm %s0, %s181
          %s183 = sshll.u32 [#allocation5], 4
          %s184 = int_to_ptr.vmem [resolvable:$true] %s183
          %189 = dma.hbm_to_vmem [thread:$0]  %s182, 256, %s184, [#allocation6], 128, 128, 8
        $region16: #{tpu_custom_call.1} parent=11 // pred_fallthru
          _
      $region12: #{tpu_custom_call.1} parent=5 // pred_fallthru
        _
      %p190 = scmp.lt.s32.totalorder %s16, 8
      // Predicated region
      $region17: #{tpu_custom_call.1} parent=5 // pred_check
        %p191 = pneg %p190
      $region18: #{tpu_custom_call.1} parent=5 // pred_check_branch
        %193 = sbr.rel (%p191) target = $region20
      $region19: #{tpu_custom_call.1} parent=5 // pred_region
        // Predicated region
        $region21: #{tpu_custom_call.1} parent=19 // pred_check
          %p194 = pneg %p89
        $region22: #{tpu_custom_call.1} parent=19 // pred_check_branch
          %196 = sbr.rel (%p194) target = $region24
        $region23: #{tpu_custom_call.1} parent=19 // pred_region
          %s197 = sand.u32 %s16, 1
          %s198 = scalar_lea.sflag [#allocation9], %s197
          %s199 = sand.u32 %s79, 1
          %s200 = smul.addr %s199, 64
          %s201 = scalar_lea.vmem [#allocation8], %s200
          %s202 = ssub.s32 1, %s24
          %s203 = smul.u32 %s202, %s25
          %s204 = smul.u32 %s24, 3
          %s205 = sadd.s32 %s203, %s204
          %s207 = ssub.s32 1024, 1024
          %208 = vsyncadd %s198, %s207
          %s209 = smul.addr %s205, 128
          %s210 = scalar_lea.hbm %s1, %s209
          %s211 = sshll.u32 %s201, 4
          %s212 = int_to_ptr.vmem [resolvable:$true] %s211
          %217 = dma.hbm_to_vmem [thread:$0]  %s210, 1024, %s212, %s198, 512, 128, 8
        $region24: #{tpu_custom_call.1} parent=19 // pred_fallthru
          _
        // Predicated region
        $region25: #{tpu_custom_call.1} parent=19 // pred_check
          %p218 = pneg %p123
        $region26: #{tpu_custom_call.1} parent=19 // pred_check_branch
          %220 = sbr.rel (%p218) target = $region28
        $region27: #{tpu_custom_call.1} parent=19 // pred_region
          %s221 = sand.u32 %s16, 1
          %s222 = scalar_lea.sflag [#allocation9], %s221
          %s223 = sand.u32 %s113, 1
          %s224 = scalar_lea.vmem [#allocation10], %s223
          %s225 = ssub.s32 1, %s24
          %s226 = smul.u32 %s225, %s25
          %s227 = smul.u32 %s24, 3
          %s228 = sadd.s32 %s226, %s227
          %s230 = ssub.s32 16, 16
          %231 = vsyncadd %s222, %s230
          %s232 = smul.addr %s228, 16
          %s233 = scalar_lea.hbm %s2, %s232
          %s235 = sshll.u32 %s224, 4
          %s236 = int_to_ptr.vmem [resolvable:$true] %s235
          %238 = dma.hbm_to_vmem [thread:$0]  %s233, 16, %s236, %s222
        $region28: #{tpu_custom_call.1} parent=19 // pred_fallthru
          _
      $region20: #{tpu_custom_call.1} parent=5 // pred_fallthru
        _
      %p239 = scmp.le.s32.totalorder 1, %s16
      %p240 = scmp.lt.s32.totalorder %s16, 9
      %p241 = pnand %p239, %p240
      %p242 = pneg %p241
      // Predicated region
      $region29: #{tpu_custom_call.1} parent=5 // pred_check
        _
      $region30: #{tpu_custom_call.1} parent=5 // pred_check_branch
        %244 = sbr.rel (%p241) target = $region32
      $region31: #{tpu_custom_call.1} parent=5 // pred_region
        %s245 = ssub.s32 %s16, 1
        // Predicated region
        $region33: #{tpu_custom_call.1} parent=31 // pred_check
          %p246 = pneg %p61
        $region34: #{tpu_custom_call.1} parent=31 // pred_check_branch
          %248 = sbr.rel (%p246) target = $region36
        $region35: #{tpu_custom_call.1} parent=31 // pred_region
          %249 = dma.done [#allocation6], 256
        $region36: #{tpu_custom_call.1} parent=31 // pred_fallthru
          _
        %s250 = sand.u32 %s21, 1
        %s251 = scalar_lea.sflag [#allocation9], %s250
        %s252 = sand.u32 %s82, 1
        %s253 = smul.addr %s252, 64
        %s254 = scalar_lea.vmem [#allocation8], %s253
        // Predicated region
        $region37: #{tpu_custom_call.1} parent=31 // pred_check
          %p255 = pneg %p95
        $region38: #{tpu_custom_call.1} parent=31 // pred_check_branch
          %257 = sbr.rel (%p255) target = $region40
        $region39: #{tpu_custom_call.1} parent=31 // pred_region
          %258 = dma.done %s251, 1024
        $region40: #{tpu_custom_call.1} parent=31 // pred_fallthru
          _
        %s259 = sand.u32 %s21, 1
        %s260 = scalar_lea.sflag [#allocation9], %s259
        %s261 = sand.u32 %s116, 1
        %s262 = scalar_lea.vmem [#allocation10], %s261
        // Predicated region
        $region41: #{tpu_custom_call.1} parent=31 // pred_check
          %p263 = pneg %p129
        $region42: #{tpu_custom_call.1} parent=31 // pred_check_branch
          %265 = sbr.rel (%p263) target = $region44
        $region43: #{tpu_custom_call.1} parent=31 // pred_region
          %266 = dma.done %s260, 16
        $region44: #{tpu_custom_call.1} parent=31 // pred_fallthru
          _
        %p267 = pneg %p61
        %p268 = pneg %p58
        %s269 = sand.u32 %s21, 1
        %s270 = scalar_lea.sflag [#allocation9], %s269
        %s271 = sand.u32 %s82, 1
        %s272 = smul.addr %s271, 64
        %s273 = scalar_lea.vmem [#allocation8], %s272
        %p274 = pneg %p95
        %p275 = pneg %p92
        %s276 = sand.u32 %s21, 1
        %s277 = scalar_lea.sflag [#allocation9], %s276
        %s278 = sand.u32 %s116, 1
        %s279 = scalar_lea.vmem [#allocation10], %s278
        %p280 = pneg %p129
        %p281 = pneg %p126
        %p282 = pneg %p159
        %p283 = pneg %p156
        %s284 = sand.u32 %s146, 1
        %s285 = scalar_lea.sflag [#allocation7], %s284
        %s286 = sand.u32 %s146, 1
        %s287 = smul.addr %s286, 16
        %s288 = scalar_lea.vmem [#allocation11], %s287
        %s289 = smul.u32 2, %s26
        %s290 = ssub.s32 1, %s27
        %s291 = smul.u32 %s290, %s28
        %s292 = smul.u32 %s27, 3
        %s293 = sadd.s32 %s291, %s292
        %s294 = ssub.s32 1, %s27
        %s295 = smul.u32 %s294, %s28
        %s296 = smul.u32 %s27, 3
        %s297 = sadd.s32 %s295, %s296
        %s298 = smul.u32 %s28, %s27
        %s299 = smul.u32 2, %s26
        %p300 = scmp.eq.s32.totalorder %s27, 0
        %p301 = scmp.eq.s32.totalorder %s28, 0
        %p302 = pnand %p300, %p301
        %p303 = pneg %p302
        // Predicated region
        $region45: #{tpu_custom_call.1} parent=31 // pred_check
          _
        $region46: #{tpu_custom_call.1} parent=31 // pred_check_branch
          %305 = sbr.rel (%p302) target = $region48
        $region47: #{tpu_custom_call.1} parent=31 // pred_region
          %vm306 = vcmask 7168
          %307 = vst.msk [vmem:[#allocation2] sm:$0xff] %vm306, -1e+30
          %308 = vst.msk [vmem:[#allocation2 + $0x8] sm:$0xff] %vm306, -1e+30
          %309 = vst.msk [vmem:[#allocation3] sm:$0xff] %vm306, 0.0
          %310 = vst.msk [vmem:[#allocation3 + $0x8] sm:$0xff] %vm306, 0.0
        $region48: #{tpu_custom_call.1} parent=31 // pred_fallthru
          _
        // Predicated region
        $region49: #{tpu_custom_call.1} parent=31 // pred_check
          %p311 = pneg %p300
        $region50: #{tpu_custom_call.1} parent=31 // pred_check_branch
          %313 = sbr.rel (%p311) target = $region52
        $region51: #{tpu_custom_call.1} parent=31 // pred_region
          %v314 = vld [vmem:[#allocation5] sm:$0xff]
          %v315 = vld [vmem:[#allocation5 + $0x8] sm:$0xff]
          %v316 = vld [vmem:[%s254] sm:$0xff]
          %v317 = vld [vmem:[%s254 + $0x8] sm:$0xff]
          %v318 = vld [vmem:[%s254 + $0x10] sm:$0xff]
          %v319 = vld [vmem:[%s254 + $0x18] sm:$0xff]
          %v320 = vld [vmem:[%s254 + $0x20] sm:$0xff]
          %v321 = vld [vmem:[%s254 + $0x28] sm:$0xff]
          %v322 = vld [vmem:[%s254 + $0x30] sm:$0xff]
          %v323 = vld [vmem:[%s254 + $0x38] sm:$0xff]
          %v324 = vld [vmem:[%s262] sm:$0x1]
          %v326 = vlaneseq
          %v327 = vshrl.u32 %v326, 7
          %v328 = vsub.s32 0, %v327
          %v329 = vrot.slane %v324, %v328
          %vm331 = vcmask 523264
          %v333 = vsel %vm331, %v314, 0
          %v336 = vsel %vm331, %v315, 0
          %338 = vmatprep.subr.mxu0 0.0
          %339 = vmatpush1.msra.mxu0 0.0
          %340 = vmatprep.subr.mxu0 0.0
          %341 = vmatpush1.msra.mxu0 0.0
          %342 = vmatprep.subr.mxu0 0.0
          %343 = vmatpush1.msra.mxu0 0.0
          %344 = vmatprep.subr.mxu0 0.0
          %345 = vmatpush1.msra.mxu0 0.0
          %346 = vmatprep.subr.mxu0 0.0
          %347 = vmatpush1.msra.mxu0 0.0
          %348 = vmatprep.subr.mxu0 0.0
          %349 = vmatpush1.msra.mxu0 0.0
          %350 = vmatprep.subr.mxu0 0.0
          %351 = vmatpush1.msra.mxu0 0.0
          %352 = vmatprep.subr.mxu0 0.0
          %353 = vmatpush1.msra.mxu0 0.0
          %354 = vmatprep.subr.mxu0 0.0
          %355 = vmatpush1.msra.mxu0 %v323
          %356 = vmatprep.subr.mxu0 0.0
          %357 = vmatpush1.msra.mxu0 %v322
          %358 = vmatprep.subr.mxu0 0.0
          %359 = vmatpush1.msra.mxu0 %v321
          %360 = vmatprep.subr.mxu0 0.0
          %361 = vmatpush1.msra.mxu0 %v320
          %362 = vmatprep.subr.mxu0 0.0
          %363 = vmatpush1.msra.mxu0 %v319
          %364 = vmatprep.subr.mxu0 0.0
          %365 = vmatpush1.msra.mxu0 %v318
          %366 = vmatprep.subr.mxu0 0.0
          %367 = vmatpush1.msra.mxu0 %v317
          %368 = vmatprep.subr.mxu0 0.0
          %369 = vmatpush1.msra.mxu0 %v316
          %370 = vmatprep.subr.mxu0 0.0
          %371 = vmatpush2.msra.mxu0 0.0
          %372 = vmatprep.subr.mxu0 0.0
          %373 = vmatpush2.msra.mxu0 0.0
          %374 = vmatprep.subr.mxu0 0.0
          %375 = vmatpush2.msra.mxu0 0.0
          %376 = vmatprep.subr.mxu0 0.0
          %377 = vmatpush2.msra.mxu0 0.0
          %378 = vmatprep.subr.mxu0 0.0
          %379 = vmatpush2.msra.mxu0 0.0
          %380 = vmatprep.subr.mxu0 0.0
          %381 = vmatpush2.msra.mxu0 0.0
          %382 = vmatprep.subr.mxu0 0.0
          %383 = vmatpush2.msra.mxu0 0.0
          %384 = vmatprep.subr.mxu0 0.0
          %385 = vmatpush2.msra.mxu0 0.0
          %386 = vmatprep.subr.mxu0 0.0
          %387 = vmatpush2.msra.mxu0 0.0
          %388 = vmatprep.subr.mxu0 0.0
          %389 = vmatpush2.msra.mxu0 0.0
          %390 = vmatprep.subr.mxu0 0.0
          %391 = vmatpush2.msra.mxu0 0.0
          %392 = vmatprep.subr.mxu0 0.0
          %393 = vmatpush2.msra.mxu0 0.0
          %394 = vmatprep.subr.mxu0 0.0
          %395 = vmatpush2.msra.mxu0 0.0
          %396 = vmatprep.subr.mxu0 0.0
          %397 = vmatpush2.msra.mxu0 0.0
          %398 = vmatprep.subr.mxu0 0.0
          %399 = vmatpush2.msra.mxu0 0.0
          %400 = vmatprep.subr.mxu0 0.0
          %401 = vmatpush2.msra.mxu0 0.0
          %402 = vmatprep.mubr.f32.mxu0 0.0
          %403 = vmatmul.mubr.f32.gmra.mxu0 %v333
          %v404 = vpop.f32.mrf.mxu0
          %v405 = vadd.f32 %v329, %v404
          %v406 = vpop.f32.mrf.mxu0
          %407 = vmatprep.mubr.f32.mxu0 0.0
          %408 = vmatmul.mubr.f32.gmra.mxu0 %v336
          %v409 = vpop.f32.mrf.mxu0
          %v410 = vadd.f32 %v329, %v409
          %v411 = vpop.f32.mrf.mxu0
          %412 = vdwg.mxu0
          %v413 = vld [vmem:[#allocation2] sm:$0xff]
          %v414 = vld [vmem:[#allocation2 + $0x8] sm:$0xff]
          %415 = vmax.xlane.f32.xlu0 %v405
          %v416 = vpop.xlane.xlu0 %415
          %417 = vmax.xlane.f32.xlu0 %v410
          %v418 = vpop.xlane.xlu0 %417
          %v419 = vmax.f32 %v413, %v416
          %v420 = vmax.f32 %v414, %v418
          %v421 = vld [vmem:[#allocation3] sm:$0xff]
          %v422 = vld [vmem:[#allocation3 + $0x8] sm:$0xff]
          %v423 = vsub.f32 %v413, %v419
          %v424 = vsub.f32 %v414, %v420
          %v425 = vmul.f32 %v423, 1.442695
          %v426 = vpow.pop %v425
          %v427 = vmul.f32 %v424, 1.442695
          %v428 = vpow.pop %v427
          %v429 = vmul.f32 %v421, %v426
          %v430 = vmul.f32 %v422, %v428
          %432 = vset.pattern.permute.xlu0 0
          %433 = vperm.xlu0 %432, %v419
          %v434 = vpop.permute.xlu0 %433
          %437 = vset.pattern.permute.xlu0 0
          %438 = vperm.xlu0 %437, %v420
          %v439 = vpop.permute.xlu0 %438
          %v441 = vsub.f32 %v405, %v434
          %v442 = vsub.f32 %v410, %v439
          %v443 = vmul.f32 %v441, 1.442695
          %v444 = vpow.pop %v443
          %v445 = vmul.f32 %v442, 1.442695
          %v446 = vpow.pop %v445
          %447 = vadd.xlane.f32.xlu0 %v444
          %v448 = vpop.xlane.xlu0 %447
          %449 = vadd.xlane.f32.xlu0 %v446
          %v450 = vpop.xlane.xlu0 %449
          %v451 = vadd.f32 %v429, %v448
          %v452 = vadd.f32 %v430, %v450
          %vm453 = vcmask 7168
          %454 = vst.msk [vmem:[#allocation3] sm:$0xff] %vm453, %v451
          %455 = vst.msk [vmem:[#allocation3 + $0x8] sm:$0xff] %vm453, %v452
          %456 = vst.msk [vmem:[#allocation2] sm:$0xff] %vm453, %v419
          %457 = vst.msk [vmem:[#allocation2 + $0x8] sm:$0xff] %vm453, %v420
          %s458 = smul.u32 %s28, 16
          %s459 = scalar_lea.vmem [#allocation4], %s458
          %460 = vst [vmem:[%s459] sm:$0xff] %v405
          %461 = vst [vmem:[%s459 + $0x8] sm:$0xff] %v410
        $region52: #{tpu_custom_call.1} parent=31 // pred_fallthru
          _
        %p462 = scmp.eq.s32.totalorder %s27, 1
        // Predicated region
        $region53: #{tpu_custom_call.1} parent=31 // pred_check
          %p463 = pneg %p462
        $region54: #{tpu_custom_call.1} parent=31 // pred_check_branch
          %465 = sbr.rel (%p463) target = $region56
        $region55: #{tpu_custom_call.1} parent=31 // pred_region
          %v466 = vld [vmem:[#allocation2] sm:$0xff]
          %v467 = vld [vmem:[#allocation2 + $0x8] sm:$0xff]
          %v468 = vld [vmem:[#allocation3] sm:$0xff]
          %v469 = vld [vmem:[#allocation3 + $0x8] sm:$0xff]
          %v470 = vlog2.pop %v468
          %v471 = vmul.f32 %v470, 0.6931472
          %v472 = vlog2.pop %v469
          %v473 = vmul.f32 %v472, 0.6931472
          %v474 = vadd.f32 %v466, %v471
          %v475 = vadd.f32 %v467, %v473
          %s476 = smul.u32 %s28, 16
          %s477 = scalar_lea.vmem [#allocation4], %s476
          %v478 = vld [vmem:[%s477] sm:$0xff]
          %v479 = vld [vmem:[%s477 + $0x8] sm:$0xff]
          %481 = vset.pattern.permute.xlu0 0
          %482 = vperm.xlu0 %481, %v474
          %v483 = vpop.permute.xlu0 %482
          %486 = vset.pattern.permute.xlu0 0
          %487 = vperm.xlu0 %486, %v475
          %v488 = vpop.permute.xlu0 %487
          %v490 = vsub.f32 %v478, %v483
          %v491 = vsub.f32 %v479, %v488
          %492 = vst [vmem:[%s288] sm:$0xff] %v490
          %493 = vst [vmem:[%s288 + $0x8] sm:$0xff] %v491
        $region56: #{tpu_custom_call.1} parent=31 // pred_fallthru
          _
        %s494 = sand.u32 %s146, 1
        %s495 = scalar_lea.sflag [#allocation7], %s494
        %s496 = sand.u32 %s146, 1
        %s497 = smul.addr %s496, 16
        %s498 = scalar_lea.vmem [#allocation11], %s497
        // Predicated region
        $region57: #{tpu_custom_call.1} parent=31 // pred_check
          %p499 = pneg %p156
        $region58: #{tpu_custom_call.1} parent=31 // pred_check_branch
          %501 = sbr.rel (%p499) target = $region60
        $region59: #{tpu_custom_call.1} parent=31 // pred_region
          %s502 = smul.u32 %s28, %s27
          %s503 = smul.u32 2, %s26
          %s505 = ssub.s32 256, 256
          %506 = vsyncadd %s495, %s505
          %s507 = smul.addr %s503, 4
          %s508 = sadd.s32 %s502, %s507
          %s509 = smul.addr %s508, 128
          %s510 = scalar_lea.hbm %s3, %s509
          %s511 = sshll.u32 %s498, 4
          %s512 = int_to_ptr.vmem [resolvable:$true] %s511
          %517 = dma.vmem_to_hbm [thread:$0]  %s512, 256, %s510, %s495, 128, 512, 8
        $region60: #{tpu_custom_call.1} parent=31 // pred_fallthru
          _
      $region32: #{tpu_custom_call.1} parent=5 // pred_fallthru
        _
      %p518 = scmp.le.s32.totalorder 2, %s16
      // Predicated region
      $region61: #{tpu_custom_call.1} parent=5 // pred_check
        %p519 = pneg %p518
      $region62: #{tpu_custom_call.1} parent=5 // pred_check_branch
        %521 = sbr.rel (%p519) target = $region64
      $region63: #{tpu_custom_call.1} parent=5 // pred_region
        %s522 = ssub.s32 %s16, 2
        // Predicated region
        $region65: #{tpu_custom_call.1} parent=63 // pred_check
          %p523 = pneg %p162
        $region66: #{tpu_custom_call.1} parent=63 // pred_check_branch
          %525 = sbr.rel (%p523) target = $region68
        $region67: #{tpu_custom_call.1} parent=63 // pred_region
          %s526 = sand.u32 %s147, 1
          %s527 = scalar_lea.sflag [#allocation7], %s526
          %s528 = sand.u32 %s147, 1
          %s529 = smul.addr %s528, 16
          %s530 = scalar_lea.vmem [#allocation11], %s529
          %531 = dma.done %s527, 256
        $region68: #{tpu_custom_call.1} parent=63 // pred_fallthru
          _
      $region64: #{tpu_custom_call.1} parent=5 // pred_fallthru
        _
    $region6: #{tpu_custom_call.1} parent=1 // loop_footer
      %s20 = sadd.s32 1, %s16
    $region7: #{tpu_custom_call.1} parent=1 // loop_footer_branch
      %15 = sbr.rel target = $region3
    $region8: #{tpu_custom_call.1} parent=1 // loop_exit
      _
    %532 = vsyncpa [#allocation6], 1
    %s533 = scalar_lea.sflag [#allocation6], 1
    %534 = vsyncpa %s533, 1
    %535 = vsyncpa [#allocation9], 1
    %s536 = scalar_lea.sflag [#allocation9], 1
    %537 = vsyncpa %s536, 1
    %538 = vsyncpa [#allocation7], 1
    %s539 = scalar_lea.sflag [#allocation7], 1
    %540 = vsyncpa %s539, 1

</llo_original>
